<compile_context>
chip_gen: v5e
topology: v5e:2x2
jax: 0.10.0
libtpu: 0.0.40
codegen_flags: <defaults>
</compile_context>

<pallas_src>
import functools

import jax
import jax.numpy as jnp
from jax.experimental import pallas as pl
from jax.experimental.pallas import tpu as pltpu

# Per-input-buffer VMEM budget (counted with lane/sublane padding). The Pallas
# pipeline double-buffers the input block, so the footprint is ~2x this plus a
# tiny output block -- comfortably inside v7x's 64 MiB physical VMEM.
_DEFAULT_BLOCK_BYTES = 8 * 1024 * 1024
_BASE_VMEM_LIMIT_BYTES = 32 * 1024 * 1024


def _gem_kernel(s_ref, x_ref, o_ref, *, eps, inv_hw):
    # s_ref : SMEM (2,) f32   -- [p, 1/p] (hoisted from the wrapper)
    # x_ref : VMEM (row_tile, H*W)
    # o_ref : VMEM (row_tile, 1)
    p = s_ref[0]
    inv_p = s_ref[1]

    def _emit(power_sum_fn):
        # Load + clamp inside the taken branch so Mosaic streams
        # load -> elementwise -> reduce without materializing extra tiles.
        x = x_ref[...]
        xc = jnp.maximum(x, eps)                      # clamp(min=eps), native dtype
        s = power_sum_fn(xc)                          # (row_tile, 1) f32 row sums
        m = s * inv_hw                                # mean over H*W
        # m ** (1/p): only row_tile elements -> cheap EUP work.
        o_ref[...] = jnp.exp(inv_p * jnp.log(m)).astype(o_ref.dtype)

    def _ipow_sum(k):
        # Pure-VPU integer power (k in {2,3,4}) in the input dtype
        # (bf16-capable VALU on v6e/v7x), accumulated in f32.
        def f(xc):
            y = xc * xc
            if k == 3:
                y = y * xc
            elif k == 4:
                y = y * y
            return jnp.sum(y.astype(jnp.float32), axis=-1, keepdims=True)
        return f

    def _general_sum(xc):
        # General (learnable / non-integer p) path: x**p = exp(p * log(x)).
        xf = xc.astype(jnp.float32)
        return jnp.sum(jnp.exp(p * jnp.log(xf)), axis=-1, keepdims=True)

    @pl.when(p == 2.0)
    def _():
        _emit(_ipow_sum(2))

    @pl.when(p == 3.0)
    def _():
        _emit(_ipow_sum(3))

    @pl.when(p == 4.0)
    def _():
        _emit(_ipow_sum(4))

    @pl.when(jnp.logical_and(p != 2.0, jnp.logical_and(p != 3.0, p != 4.0)))
    def _():
        _emit(_general_sum)


def _round_up(v, m):
    return ((v + m - 1) // m) * m


def _pick_row_tile(n_rows, padded_row_bytes, block_bytes, sublane):
    """Row tile (multiple of the dtype sublane tile) that (a) fits the padded
    VMEM budget and (b) yields enough grid steps for pipelining / megacore."""
    total_bytes = n_rows * padded_row_bytes
    if total_bytes > 8 * 1024 * 1024:
        min_steps = 8
    elif total_bytes > 2 * 1024 * 1024:
        min_steps = 4
    elif total_bytes > 512 * 1024:
        min_steps = 2
    else:
        min_steps = 1

    rows_for_steps = _round_up(pl.cdiv(n_rows, min_steps), sublane)
    rows_for_budget = max(
        sublane, (block_bytes // max(padded_row_bytes, 1)) // sublane * sublane)
    row_tile = max(sublane, min(rows_for_steps, rows_for_budget))
    return min(row_tile, _round_up(n_rows, sublane))


def gem_forward(x, p, eps=1e-6, block_bytes=_DEFAULT_BLOCK_BYTES):
    """x: (B, C, H, W), p: (1,) learnable exponent -> (B, C, 1, 1)."""
    B, C, H, W = x.shape
    BC, HW = B * C, H * W
    x2 = x.reshape(BC, HW)                     # pure view: no HBM copy, no padding

    itemsize = x2.dtype.itemsize
    sublane = max(8, 32 // itemsize)           # 8 for f32, 16 for bf16, 32 for int8
    padded_row_bytes = pl.cdiv(HW, 128) * 128 * itemsize   # lane-padded VMEM row

    row_tile = _pick_row_tile(BC, padded_row_bytes, block_bytes, sublane)
    # Last block may over-read past BC; those rows are row-local garbage and
    # their (out-of-bounds) output rows are never written back by Pallas.
    grid = (pl.cdiv(BC, row_tile),)

    # Real double-buffered footprint (padded); keep a small headroom.
    block_padded_bytes = row_tile * padded_row_bytes
    vmem_limit = min(96 * 1024 * 1024,
                     max(_BASE_VMEM_LIMIT_BYTES,
                         2 * block_padded_bytes + 2 * 1024 * 1024))

    p32 = jnp.reshape(p, (1,)).astype(jnp.float32)
    scalars = jnp.concatenate([p32, 1.0 / p32])     # [p, 1/p] -> SMEM

    # Path-aware-ish cost hint: assume the integer fast path (the common case);
    # per-element work ~ clamp + 2 muls + add, transcendentals only per row.
    cost = pl.CostEstimate(
        flops=4 * BC * HW + 4 * BC,
        transcendentals=2 * BC,
        bytes_accessed=BC * HW * itemsize + BC * itemsize + 8,
    )

    out = pl.pallas_call(
        functools.partial(_gem_kernel, eps=float(eps), inv_hw=1.0 / HW),
        out_shape=jax.ShapeDtypeStruct((BC, 1), x.dtype),
        grid_spec=pltpu.PrefetchScalarGridSpec(
            num_scalar_prefetch=0,
            grid=grid,
            in_specs=[
                pl.BlockSpec(memory_space=pltpu.MemorySpace.SMEM),   # [p, 1/p]
                pl.BlockSpec((row_tile, HW), lambda i: (i, 0)),      # x tile
            ],
            out_specs=pl.BlockSpec((row_tile, 1), lambda i: (i, 0)),
        ),
        compiler_params=pltpu.CompilerParams(
            dimension_semantics=("parallel",),
            vmem_limit_bytes=vmem_limit,
        ),
        cost_estimate=cost,
    )(scalars, x2)

    return out.reshape(B, C, 1, 1)


def gem_reference(x, p, eps=1e-6):
    xp = jnp.power(jnp.maximum(x, eps), p[0])
    m = jnp.mean(xp, axis=(-2, -1), keepdims=True)
    return jnp.power(m, 1.0 / p[0])


if __name__ == "__main__":
    key = jax.random.PRNGKey(0)
    eps = 1e-6

    # Canonical small shape implied by the module: (B, C, H, W) = (2, 4, 16, 16).
    x = jax.random.uniform(key, (2, 4, 16, 16), dtype=jnp.float32)

    # Matches nn.Parameter(torch.ones(1) * 3) -> exercises the p==3 fast path.
    p3 = jnp.ones((1,), dtype=jnp.float32) * 3.0
    y = jax.block_until_ready(gem_forward(x, p3, eps))
    y_ref = gem_reference(x, p3, eps)
    assert y.shape == (2, 4, 1, 1), y.shape
    assert jnp.allclose(y, y_ref, atol=1e-5, rtol=1e-5), (
        float(jnp.max(jnp.abs(y - y_ref))))

    # Other integer fast paths (p == 2, p == 4).
    for pv in (2.0, 4.0):
        pp = jnp.ones((1,), dtype=jnp.float32) * pv
        yp = jax.block_until_ready(gem_forward(x, pp, eps))
        yp_ref = gem_reference(x, pp, eps)
        assert jnp.allclose(yp, yp_ref, atol=1e-5, rtol=1e-5), (
            pv, float(jnp.max(jnp.abs(yp - yp_ref))))

    # Non-integer exponent -> general exp/log (EUP) path.
    p25 = jnp.ones((1,), dtype=jnp.float32) * 2.5
    y2 = jax.block_until_ready(gem_forward(x, p25, eps))
    y2_ref = gem_reference(x, p25, eps)
    assert jnp.allclose(y2, y2_ref, atol=1e-5, rtol=1e-5), (
        float(jnp.max(jnp.abs(y2 - y2_ref))))

    # Multi-block grid with a ragged tail (BC=36, 8-row tiles forced by a tiny
    # block budget) -- validates the no-padding remainder handling.
    xb = jax.random.uniform(jax.random.PRNGKey(1), (3, 12, 16, 16), jnp.float32)
    y3 = jax.block_until_ready(gem_forward(xb, p3, eps, block_bytes=8 * 1024))
    y3_ref = gem_reference(xb, p3, eps)
    assert y3.shape == (3, 12, 1, 1), y3.shape
    assert jnp.allclose(y3, y3_ref, atol=1e-5, rtol=1e-5), (
        float(jnp.max(jnp.abs(y3 - y3_ref))))

    # Larger f32 case: the minimum-step heuristic splits it into >= 2 grid
    # steps automatically (software pipelining / v7x megacore sharding).
    xl = jax.random.uniform(jax.random.PRNGKey(2), (2, 256, 32, 32), jnp.float32)
    y4 = jax.block_until_ready(gem_forward(xl, p3, eps))
    y4_ref = gem_reference(xl, p3, eps)
    assert jnp.allclose(y4, y4_ref, atol=1e-5, rtol=1e-5), (
        float(jnp.max(jnp.abs(y4 - y4_ref))))

    # bf16 input: native-dtype clamp/cube with f32 accumulation, 16-row sublane
    # tiles, HW < 128 (lane-padded row accounting), ragged multi-block grid.
    xh = jax.random.uniform(jax.random.PRNGKey(3), (2, 13, 8, 8),
                            dtype=jnp.bfloat16)
    y5 = jax.block_until_ready(gem_forward(xh, p3, eps, block_bytes=4 * 1024))
    y5_ref = gem_reference(xh.astype(jnp.float32), p3, eps)
    assert y5.shape == (2, 13, 1, 1), y5.shape
    assert jnp.allclose(y5.astype(jnp.float32), y5_ref, atol=1e-2, rtol=2e-2), (
        float(jnp.max(jnp.abs(y5.astype(jnp.float32) - y5_ref))))

    print("KERNEL_OK")
</pallas_src>

<mosaic_0001>
module attributes {stable_mosaic.version = 11 : i64} {
  func.func @_gem_kernel(%arg0: i32, %arg1: memref<2xf32, #tpu.memory_space<smem>>, %arg2: memref<8x256xf32, #tpu.memory_space<vmem>>, %arg3: memref<8x1xf32, #tpu.memory_space<vmem>>) attributes {dimension_semantics = [#tpu.dimension_semantics<parallel>], iteration_bounds = array<i64: 1>, scalar_prefetch = 0 : i64, scratch_operands = 0 : i64, tpu.core_type = #tpu.core_type<tc>, window_params = [{transform_indices = @transform_0, window_bounds = array<i64: 2>}, {transform_indices = @transform_1, window_bounds = array<i64: 8, 256>}, {transform_indices = @transform_2, window_bounds = array<i64: 8, 1>}]} {
    %c0 = arith.constant 0 : index
    %0 = memref.load %arg1[%c0] : memref<2xf32, #tpu.memory_space<smem>>
    %c1 = arith.constant 1 : index
    %1 = memref.load %arg1[%c1] : memref<2xf32, #tpu.memory_space<smem>>
    %cst = arith.constant 2.000000e+00 : f32
    %2 = arith.cmpf oeq, %0, %cst : f32
    %3 = arith.extui %2 : i1 to i32
    %c0_i32 = arith.constant 0 : i32
    %4 = arith.cmpi ne, %3, %c0_i32 : i32
    scf.if %4 {
      %c0_8 = arith.constant 0 : index
      %c0_9 = arith.constant 0 : index
      %18 = vector.load %arg2[%c0_8, %c0_9] : memref<8x256xf32, #tpu.memory_space<vmem>>, vector<8x256xf32>
      %cst_10 = arith.constant 9.99999997E-7 : f32
      %19 = vector.broadcast %cst_10 : f32 to vector<8x256xf32>
      %20 = arith.maximumf %18, %19 : vector<8x256xf32>
      %21 = arith.mulf %20, %20 : vector<8x256xf32>
      %cst_11 = arith.constant dense<0.000000e+00> : vector<8xf32>
      %22 = vector.multi_reduction <add>, %21, %cst_11 [1] : vector<8x256xf32> to vector<8xf32>
      %23 = vector.shape_cast %22 : vector<8xf32> to vector<8x1xf32>
      %cst_12 = arith.constant 3.906250e-03 : f32
      %24 = vector.broadcast %cst_12 : f32 to vector<8x1xf32>
      %25 = arith.mulf %23, %24 : vector<8x1xf32>
      %26 = math.log %25 : vector<8x1xf32>
      %27 = vector.broadcast %1 : f32 to vector<8x1xf32>
      %28 = arith.mulf %27, %26 : vector<8x1xf32>
      %29 = math.exp %28 : vector<8x1xf32>
      %c0_13 = arith.constant 0 : index
      %c0_14 = arith.constant 0 : index
      %30 = vector.load %arg3[%c0_13, %c0_14] : memref<8x1xf32, #tpu.memory_space<vmem>>, vector<8x1xf32>
      tpu.vector_store %arg3[%c0_13, %c0_14], %29 {strides = array<i32>} : memref<8x1xf32, #tpu.memory_space<vmem>>, vector<8x1xf32>,
    } else {
    }
    %cst_0 = arith.constant 3.000000e+00 : f32
    %5 = arith.cmpf oeq, %0, %cst_0 : f32
    %6 = arith.extui %5 : i1 to i32
    %c0_i32_1 = arith.constant 0 : i32
    %7 = arith.cmpi ne, %6, %c0_i32_1 : i32
    scf.if %7 {
      %c0_8 = arith.constant 0 : index
      %c0_9 = arith.constant 0 : index
      %18 = vector.load %arg2[%c0_8, %c0_9] : memref<8x256xf32, #tpu.memory_space<vmem>>, vector<8x256xf32>
      %cst_10 = arith.constant 9.99999997E-7 : f32
      %19 = vector.broadcast %cst_10 : f32 to vector<8x256xf32>
      %20 = arith.maximumf %18, %19 : vector<8x256xf32>
      %21 = arith.mulf %20, %20 : vector<8x256xf32>
      %22 = arith.mulf %21, %20 : vector<8x256xf32>
      %cst_11 = arith.constant dense<0.000000e+00> : vector<8xf32>
      %23 = vector.multi_reduction <add>, %22, %cst_11 [1] : vector<8x256xf32> to vector<8xf32>
      %24 = vector.shape_cast %23 : vector<8xf32> to vector<8x1xf32>
      %cst_12 = arith.constant 3.906250e-03 : f32
      %25 = vector.broadcast %cst_12 : f32 to vector<8x1xf32>
      %26 = arith.mulf %24, %25 : vector<8x1xf32>
      %27 = math.log %26 : vector<8x1xf32>
      %28 = vector.broadcast %1 : f32 to vector<8x1xf32>
      %29 = arith.mulf %28, %27 : vector<8x1xf32>
      %30 = math.exp %29 : vector<8x1xf32>
      %c0_13 = arith.constant 0 : index
      %c0_14 = arith.constant 0 : index
      %31 = vector.load %arg3[%c0_13, %c0_14] : memref<8x1xf32, #tpu.memory_space<vmem>>, vector<8x1xf32>
      tpu.vector_store %arg3[%c0_13, %c0_14], %30 {strides = array<i32>} : memref<8x1xf32, #tpu.memory_space<vmem>>, vector<8x1xf32>,
    } else {
    }
    %cst_2 = arith.constant 4.000000e+00 : f32
    %8 = arith.cmpf oeq, %0, %cst_2 : f32
    %9 = arith.extui %8 : i1 to i32
    %c0_i32_3 = arith.constant 0 : i32
    %10 = arith.cmpi ne, %9, %c0_i32_3 : i32
    scf.if %10 {
      %c0_8 = arith.constant 0 : index
      %c0_9 = arith.constant 0 : index
      %18 = vector.load %arg2[%c0_8, %c0_9] : memref<8x256xf32, #tpu.memory_space<vmem>>, vector<8x256xf32>
      %cst_10 = arith.constant 9.99999997E-7 : f32
      %19 = vector.broadcast %cst_10 : f32 to vector<8x256xf32>
      %20 = arith.maximumf %18, %19 : vector<8x256xf32>
      %21 = arith.mulf %20, %20 : vector<8x256xf32>
      %22 = arith.mulf %21, %21 : vector<8x256xf32>
      %cst_11 = arith.constant dense<0.000000e+00> : vector<8xf32>
      %23 = vector.multi_reduction <add>, %22, %cst_11 [1] : vector<8x256xf32> to vector<8xf32>
      %24 = vector.shape_cast %23 : vector<8xf32> to vector<8x1xf32>
      %cst_12 = arith.constant 3.906250e-03 : f32
      %25 = vector.broadcast %cst_12 : f32 to vector<8x1xf32>
      %26 = arith.mulf %24, %25 : vector<8x1xf32>
      %27 = math.log %26 : vector<8x1xf32>
      %28 = vector.broadcast %1 : f32 to vector<8x1xf32>
      %29 = arith.mulf %28, %27 : vector<8x1xf32>
      %30 = math.exp %29 : vector<8x1xf32>
      %c0_13 = arith.constant 0 : index
      %c0_14 = arith.constant 0 : index
      %31 = vector.load %arg3[%c0_13, %c0_14] : memref<8x1xf32, #tpu.memory_space<vmem>>, vector<8x1xf32>
      tpu.vector_store %arg3[%c0_13, %c0_14], %30 {strides = array<i32>} : memref<8x1xf32, #tpu.memory_space<vmem>>, vector<8x1xf32>,
    } else {
    }
    %cst_4 = arith.constant 2.000000e+00 : f32
    %11 = arith.cmpf one, %0, %cst_4 : f32
    %cst_5 = arith.constant 3.000000e+00 : f32
    %12 = arith.cmpf one, %0, %cst_5 : f32
    %cst_6 = arith.constant 4.000000e+00 : f32
    %13 = arith.cmpf one, %0, %cst_6 : f32
    %14 = arith.andi %12, %13 : i1
    %15 = arith.andi %11, %14 : i1
    %16 = arith.extui %15 : i1 to i32
    %c0_i32_7 = arith.constant 0 : i32
    %17 = arith.cmpi ne, %16, %c0_i32_7 : i32
    scf.if %17 {
      %c0_8 = arith.constant 0 : index
      %c0_9 = arith.constant 0 : index
      %18 = vector.load %arg2[%c0_8, %c0_9] : memref<8x256xf32, #tpu.memory_space<vmem>>, vector<8x256xf32>
      %cst_10 = arith.constant 9.99999997E-7 : f32
      %19 = vector.broadcast %cst_10 : f32 to vector<8x256xf32>
      %20 = arith.maximumf %18, %19 : vector<8x256xf32>
      %21 = math.log %20 : vector<8x256xf32>
      %22 = vector.broadcast %0 : f32 to vector<8x256xf32>
      %23 = arith.mulf %22, %21 : vector<8x256xf32>
      %24 = math.exp %23 : vector<8x256xf32>
      %cst_11 = arith.constant dense<0.000000e+00> : vector<8xf32>
      %25 = vector.multi_reduction <add>, %24, %cst_11 [1] : vector<8x256xf32> to vector<8xf32>
      %26 = vector.shape_cast %25 : vector<8xf32> to vector<8x1xf32>
      %cst_12 = arith.constant 3.906250e-03 : f32
      %27 = vector.broadcast %cst_12 : f32 to vector<8x1xf32>
      %28 = arith.mulf %26, %27 : vector<8x1xf32>
      %29 = math.log %28 : vector<8x1xf32>
      %30 = vector.broadcast %1 : f32 to vector<8x1xf32>
      %31 = arith.mulf %30, %29 : vector<8x1xf32>
      %32 = math.exp %31 : vector<8x1xf32>
      %c0_13 = arith.constant 0 : index
      %c0_14 = arith.constant 0 : index
      %33 = vector.load %arg3[%c0_13, %c0_14] : memref<8x1xf32, #tpu.memory_space<vmem>>, vector<8x1xf32>
      tpu.vector_store %arg3[%c0_13, %c0_14], %32 {strides = array<i32>} : memref<8x1xf32, #tpu.memory_space<vmem>>, vector<8x1xf32>,
    } else {
    }
    return
  }
  func.func @transform_0(%arg0: i32) -> i32 {
    %c0_i32 = arith.constant 0 : i32
    %c0_i32_0 = arith.constant 0 : i32
    return %c0_i32 : i32
  }
  func.func @transform_1(%arg0: i32) -> (i32, i32) {
    %c0_i32 = arith.constant 0 : i32
    %c0_i32_0 = arith.constant 0 : i32
    return %arg0, %c0_i32 : i32, i32
  }
  func.func @transform_2(%arg0: i32) -> (i32, i32) {
    %c0_i32 = arith.constant 0 : i32
    %c0_i32_0 = arith.constant 0 : i32
    return %arg0, %c0_i32 : i32, i32
  }
}

</mosaic_0001>

<llo_original>
// kernel: tpu_custom_call.1
$region0: #{tpu_custom_call.1}
  #allocation0 [shape = 'u32[]', space=smem, size = 0x4, offset = 0x4, fixed_abs, tag = 'smem constant byte address 0x4 - core index']
  #allocation1 [shape = 'u32[72,128]{1,0:T(1,128)}', space=vmem, size = 0x9000, scoped, tag = 'internal scratch']
  %s0 = inlined_call_operand.hbm [shape: f32[2], index: 0, kind: input, shape index: {}]
  %s1 = inlined_call_operand.hbm [shape: f32[8,256], index: 1, kind: input, shape index: {}]
  %s2 = inlined_call_operand.vmem [shape: f32[8,1], index: 2, kind: output, shape index: {}]
  %s3 = sld [smem:[#allocation0]]
  $region42: #{tpu_custom_call.1} parent=0
    _
  %s5 = ssub.s32 1, %s3
  %s6 = scalar_select 0, %s5, %s3
  $region1: #{tpu_custom_call.1} parent=0
    #allocation2 [shape = 'u8[512]{0}', space=smem, size = 0x200, scoped, tag = 'input window, operand 0, single buffered']
    #allocation3 [shape = 's32[1]{0}', space=sflag, size = 0x4, scoped, tag = 'scoped memory for tpu_custom_call.1']
    #allocation4 [shape = 's32[1]{0}', space=sflag, size = 0x4, scoped, tag = 'scoped memory for tpu_custom_call.1']
    #allocation5 [shape = 'u8[8192]{0}', space=vmem, size = 0x2000, scoped, tag = 'input window, operand 1, single buffered']
    %7 = vsyncpa [#allocation4], 0
    %8 = vsyncpa [#allocation3], 0
    // Predicated region
    $region2: #{tpu_custom_call.1} parent=1 // pred_check
      _
    $region3: #{tpu_custom_call.1} parent=1 // pred_check_branch
      %10 = sbr.rel (0) target = $region5
    $region4: #{tpu_custom_call.1} parent=1 // pred_region
      %12 = vsyncadd [#allocation4], 0
      %s14 = sshll.u32 %s0, 4
      %s15 = int_to_ptr.hbm [resolvable:$true] %s14
      %17 = dma.hbm_to_smem %s15, 16, [#allocation2], [#allocation4]
    $region5: #{tpu_custom_call.1} parent=1 // pred_fallthru
      _
    // Predicated region
    $region6: #{tpu_custom_call.1} parent=1 // pred_check
      _
    $region7: #{tpu_custom_call.1} parent=1 // pred_check_branch
      %19 = sbr.rel (0) target = $region9
    $region8: #{tpu_custom_call.1} parent=1 // pred_region
      %21 = vsyncadd [#allocation3], 0
      %s23 = sshll.u32 %s1, 4
      %s24 = int_to_ptr.hbm [resolvable:$true] %s23
      %s25 = sshll.u32 [#allocation5], 4
      %s26 = int_to_ptr.vmem [resolvable:$true] %s25
      %28 = dma.hbm_to_vmem [thread:$0]  %s24, 256, %s26, [#allocation3]
    $region9: #{tpu_custom_call.1} parent=1 // pred_fallthru
      _
    // Predicated region
    $region10: #{tpu_custom_call.1} parent=1 // pred_check
      _
    $region11: #{tpu_custom_call.1} parent=1 // pred_check_branch
      %30 = sbr.rel (0) target = $region13
    $region12: #{tpu_custom_call.1} parent=1 // pred_region
      %32 = dma.done [#allocation4], 16
    $region13: #{tpu_custom_call.1} parent=1 // pred_fallthru
      _
    // Predicated region
    $region14: #{tpu_custom_call.1} parent=1 // pred_check
      _
    $region15: #{tpu_custom_call.1} parent=1 // pred_check_branch
      %34 = sbr.rel (0) target = $region17
    $region16: #{tpu_custom_call.1} parent=1 // pred_region
      %36 = dma.done [#allocation3], 256
    $region17: #{tpu_custom_call.1} parent=1 // pred_fallthru
      _
    %37 = sfence
    %s38 = sld [smem:[#allocation2]]
    %s39 = sld [smem:[#allocation2 + $0x1]]
    %p40 = scmp.eq.f32.partialorder %s38, 2.0
    // Predicated region
    $region18: #{tpu_custom_call.1} parent=1 // pred_check
      %p41 = pneg %p40
    $region19: #{tpu_custom_call.1} parent=1 // pred_check_branch
      %43 = sbr.rel (%p41) target = $region21
    $region20: #{tpu_custom_call.1} parent=1 // pred_region
      %v44 = vld [vmem:[#allocation5] sm:$0xff]
      %v45 = vld [vmem:[#allocation5 + $0x8] sm:$0xff]
      %v46 = vmax.f32 %v44, 1e-06
      %v47 = vmax.f32 %v45, 1e-06
      %v48 = vmul.f32 %v46, %v46
      %v49 = vmul.f32 %v47, %v47
      %v50 = vadd.f32 %v48, %v49
      %51 = vadd.xlane.f32.xlu0 %v50
      %v52 = vpop.xlane.xlu0 %51
      %v53 = vmul.f32 %v52, 0.00390625
      %v54 = vlog2.pop %v53
      %v55 = vmul.f32 %v54, 0.6931472
      %v56 = vstv %s39
      %v57 = vmul.f32 %v56, %v55
      %v58 = vmul.f32 %v57, 1.442695
      %v59 = vpow.pop %v58
      %vm60 = vcmask 7168
      %61 = vst.msk [vmem:[%s2] sm:$0xff] %vm60, %v59
    $region21: #{tpu_custom_call.1} parent=1 // pred_fallthru
      _
    %p62 = scmp.eq.f32.partialorder %s38, 3.0
    // Predicated region
    $region22: #{tpu_custom_call.1} parent=1 // pred_check
      %p63 = pneg %p62
    $region23: #{tpu_custom_call.1} parent=1 // pred_check_branch
      %65 = sbr.rel (%p63) target = $region25
    $region24: #{tpu_custom_call.1} parent=1 // pred_region
      %v66 = vld [vmem:[#allocation5] sm:$0xff]
      %v67 = vld [vmem:[#allocation5 + $0x8] sm:$0xff]
      %v68 = vmax.f32 %v66, 1e-06
      %v69 = vmax.f32 %v67, 1e-06
      %v70 = vmul.f32 %v68, %v68
      %v71 = vmul.f32 %v69, %v69
      %v72 = vmul.f32 %v70, %v68
      %v73 = vmul.f32 %v71, %v69
      %v74 = vadd.f32 %v72, %v73
      %75 = vadd.xlane.f32.xlu0 %v74
      %v76 = vpop.xlane.xlu0 %75
      %v77 = vmul.f32 %v76, 0.00390625
      %v78 = vlog2.pop %v77
      %v79 = vmul.f32 %v78, 0.6931472
      %v80 = vstv %s39
      %v81 = vmul.f32 %v80, %v79
      %v82 = vmul.f32 %v81, 1.442695
      %v83 = vpow.pop %v82
      %vm84 = vcmask 7168
      %85 = vst.msk [vmem:[%s2] sm:$0xff] %vm84, %v83
    $region25: #{tpu_custom_call.1} parent=1 // pred_fallthru
      _
    %p86 = scmp.eq.f32.partialorder %s38, 4.0
    // Predicated region
    $region26: #{tpu_custom_call.1} parent=1 // pred_check
      %p87 = pneg %p86
    $region27: #{tpu_custom_call.1} parent=1 // pred_check_branch
      %89 = sbr.rel (%p87) target = $region29
    $region28: #{tpu_custom_call.1} parent=1 // pred_region
      %v90 = vld [vmem:[#allocation5] sm:$0xff]
      %v91 = vld [vmem:[#allocation5 + $0x8] sm:$0xff]
      %v92 = vmax.f32 %v90, 1e-06
      %v93 = vmax.f32 %v91, 1e-06
      %v94 = vmul.f32 %v92, %v92
      %v95 = vmul.f32 %v93, %v93
      %v96 = vmul.f32 %v94, %v94
      %v97 = vmul.f32 %v95, %v95
      %v98 = vadd.f32 %v96, %v97
      %99 = vadd.xlane.f32.xlu0 %v98
      %v100 = vpop.xlane.xlu0 %99
      %v101 = vmul.f32 %v100, 0.00390625
      %v102 = vlog2.pop %v101
      %v103 = vmul.f32 %v102, 0.6931472
      %v104 = vstv %s39
      %v105 = vmul.f32 %v104, %v103
      %v106 = vmul.f32 %v105, 1.442695
      %v107 = vpow.pop %v106
      %vm108 = vcmask 7168
      %109 = vst.msk [vmem:[%s2] sm:$0xff] %vm108, %v107
    $region29: #{tpu_custom_call.1} parent=1 // pred_fallthru
      _
    %p110 = scmp.ne.f32.partialorder %s38, 2.0
    %p111 = scmp.ne.f32.partialorder %s38, 3.0
    %p112 = scmp.ne.f32.partialorder %s38, 4.0
    %p113 = pnand %p111, %p112
    %p114 = pneg %p113
    %p115 = pnand %p110, %p114
    %p116 = pneg %p115
    // Predicated region
    $region30: #{tpu_custom_call.1} parent=1 // pred_check
      _
    $region31: #{tpu_custom_call.1} parent=1 // pred_check_branch
      %118 = sbr.rel (%p115) target = $region33
    $region32: #{tpu_custom_call.1} parent=1 // pred_region
      %v119 = vld [vmem:[#allocation5] sm:$0xff]
      %v120 = vld [vmem:[#allocation5 + $0x8] sm:$0xff]
      %v121 = vmax.f32 %v119, 1e-06
      %v122 = vmax.f32 %v120, 1e-06
      %v123 = vlog2.pop %v121
      %v124 = vmul.f32 %v123, 0.6931472
      %v125 = vlog2.pop %v122
      %v126 = vmul.f32 %v125, 0.6931472
      %v127 = vstv %s38
      %v128 = vmul.f32 %v127, %v124
      %v129 = vmul.f32 %v127, %v126
      %v130 = vmul.f32 %v128, 1.442695
      %v131 = vpow.pop %v130
      %v132 = vmul.f32 %v129, 1.442695
      %v133 = vpow.pop %v132
      %v134 = vadd.f32 %v131, %v133
      %135 = vadd.xlane.f32.xlu0 %v134
      %v136 = vpop.xlane.xlu0 %135
      %v137 = vmul.f32 %v136, 0.00390625
      %v138 = vlog2.pop %v137
      %v139 = vmul.f32 %v138, 0.6931472
      %v140 = vstv %s39
      %v141 = vmul.f32 %v140, %v139
      %v142 = vmul.f32 %v141, 1.442695
      %v143 = vpow.pop %v142
      %vm144 = vcmask 7168
      %145 = vst.msk [vmem:[%s2] sm:$0xff] %vm144, %v143
    $region33: #{tpu_custom_call.1} parent=1 // pred_fallthru
      _
    // Predicated region
    $region34: #{tpu_custom_call.1} parent=1 // pred_check
      _
    $region35: #{tpu_custom_call.1} parent=1 // pred_check_branch
      %147 = sbr.rel (0) target = $region37
    $region36: #{tpu_custom_call.1} parent=1 // pred_region
      _
    $region37: #{tpu_custom_call.1} parent=1 // pred_fallthru
      _
    // Predicated region
    $region38: #{tpu_custom_call.1} parent=1 // pred_check
      _
    $region39: #{tpu_custom_call.1} parent=1 // pred_check_branch
      %149 = sbr.rel (0) target = $region41
    $region40: #{tpu_custom_call.1} parent=1 // pred_region
      _
    $region41: #{tpu_custom_call.1} parent=1 // pred_fallthru
      _
    %150 = vsyncpa [#allocation3], 1
    %151 = vsyncpa [#allocation4], 1

</llo_original>
